<compile_context>
chip_gen: v5e
topology: v5e:2x2
jax: 0.10.0
libtpu: 0.0.40
codegen_flags: <defaults>
</compile_context>

<pallas_src>
import functools

import jax
import jax.numpy as jnp
from jax import lax
from jax.experimental import pallas as pl
from jax.experimental.pallas import tpu as pltpu


def _round_up(x, m):
    return ((x + m - 1) // m) * m


# ---------------------------------------------------------------------------
# Kernels
# ---------------------------------------------------------------------------

def _linear_kernel_single_k(x_ref, w_ref, b_ref, o_ref, *, use_bf16_mxu):
    """One (tm, tn) tile of o = x @ w.T + b when the whole K fits in one tile."""
    x = x_ref[...]
    w = w_ref[...]
    if use_bf16_mxu:
        x = x.astype(jnp.bfloat16)
        w = w.astype(jnp.bfloat16)
    acc = lax.dot_general(
        x, w, dimension_numbers=(((1,), (1,)), ((), ())),
        preferred_element_type=jnp.float32)
    o_ref[...] = (acc + b_ref[...]).astype(o_ref.dtype)


def _linear_kernel_multi_k(x_ref, w_ref, b_ref, o_ref, *, use_bf16_mxu):
    """Accumulate x @ w.T directly into the f32, VMEM-resident output tile."""
    k = pl.program_id(3)

    @pl.when(k == 0)
    def _():
        # Initialize the output tile with the broadcast bias -> no finalize pass.
        o_ref[...] = jnp.broadcast_to(b_ref[...], o_ref.shape).astype(o_ref.dtype)

    x = x_ref[...]
    w = w_ref[...]
    if use_bf16_mxu:
        x = x.astype(jnp.bfloat16)
        w = w.astype(jnp.bfloat16)
    o_ref[...] += lax.dot_general(
        x, w, dimension_numbers=(((1,), (1,)), ((), ())),
        preferred_element_type=jnp.float32).astype(o_ref.dtype)


# ---------------------------------------------------------------------------
# Tile selection (minimize padding waste, cap footprint)
# ---------------------------------------------------------------------------

def _pick_m_tile(batch):
    bm = _round_up(batch, 8)
    if bm <= 512:
        return bm, bm                       # single M tile, minimal padding
    best = None
    for cand in (512, 256, 128):            # larger first -> wins ties
        mp = _round_up(batch, cand)
        if best is None or mp < best[1]:
            best = (cand, mp)
    return best


def _pick_n_tile(np_padded):
    if np_padded <= 512:
        return np_padded
    for cand in (512, 256):
        if np_padded % cand == 0:
            return cand
    return 128


def _pick_k_tile(kp_padded):
    if kp_padded <= 2048:
        return kp_padded
    for cand in range(2048, 127, -128):
        if kp_padded % cand == 0:
            return cand
    return 128


# ---------------------------------------------------------------------------
# Forward pass
# ---------------------------------------------------------------------------

@functools.partial(jax.jit, static_argnums=(4, 5, 6))
def _predictor_forward(p_feat, d_feat, w_packed, b_packed, hidden_dim,
                       force_pallas, use_bf16_mxu):
    B, K = p_feat.shape
    H = hidden_dim
    _, Np, Kp = w_packed.shape

    # Tiny-shape fallback: pad/launch overhead dwarfs ~KFLOP-sized problems.
    if not force_pallas and (2 * B * K * H) < (1 << 22):
        w = w_packed[:, :H, :K]
        b = b_packed[:, 0, :H]
        hp = jnp.dot(p_feat, w[0].T, precision=lax.Precision.HIGHEST) + b[0]
        hd = jnp.dot(d_feat, w[1].T, precision=lax.Precision.HIGHEST) + b[1]
        return hp, hd

    tm, Mp = _pick_m_tile(B)
    tn = _pick_n_tile(Np)
    tk = _pick_k_tile(Kp)
    nm, nn_, nk = Mp // tm, Np // tn, Kp // tk

    # Per-call work: only the activations are stacked / padded.
    x = jnp.stack([p_feat, d_feat]).astype(jnp.float32)          # (2, B, K)
    x = jnp.pad(x, ((0, 0), (0, Mp - B), (0, Kp - K)))

    flops = 2 * 2 * Mp * Kp * Np
    bytes_accessed = (x.size * 4 * nn_            # x re-read once per N tile
                      + w_packed.size * 4 * nm    # w re-read once per M tile
                      + b_packed.size * 4
                      + 2 * Mp * Np * 4)

    if nk == 1:
        kernel = functools.partial(_linear_kernel_single_k,
                                   use_bf16_mxu=use_bf16_mxu)
        grid = (2, nm, nn_)
        in_specs = [
            pl.BlockSpec((None, tm, tk), lambda l, i, j: (l, i, 0)),
            pl.BlockSpec((None, tn, tk), lambda l, i, j: (l, j, 0)),
            pl.BlockSpec((None, 1, tn), lambda l, i, j: (l, 0, j)),
        ]
        out_specs = pl.BlockSpec((None, tm, tn), lambda l, i, j: (l, i, j))
        semantics = ("parallel", "parallel", "parallel")
    else:
        kernel = functools.partial(_linear_kernel_multi_k,
                                   use_bf16_mxu=use_bf16_mxu)
        grid = (2, nm, nn_, nk)
        in_specs = [
            pl.BlockSpec((None, tm, tk), lambda l, i, j, k: (l, i, k)),
            pl.BlockSpec((None, tn, tk), lambda l, i, j, k: (l, j, k)),
            pl.BlockSpec((None, 1, tn), lambda l, i, j, k: (l, 0, j)),
        ]
        out_specs = pl.BlockSpec((None, tm, tn), lambda l, i, j, k: (l, i, j))
        semantics = ("parallel", "parallel", "parallel", "arbitrary")

    out = pl.pallas_call(
        kernel,
        out_shape=jax.ShapeDtypeStruct((2, Mp, Np), jnp.float32),
        grid=grid,
        in_specs=in_specs,
        out_specs=out_specs,
        compiler_params=pltpu.CompilerParams(dimension_semantics=semantics),
        cost_estimate=pl.CostEstimate(flops=flops, transcendentals=0,
                                      bytes_accessed=bytes_accessed),
    )(x, w_packed, b_packed)

    out = out.astype(p_feat.dtype)
    # When B == Mp and H == Np these slices are trivial (leading-index only).
    return out[0, :B, :H], out[1, :B, :H]


class PallasPredictor:
    """Pallas equivalent of the PyTorch `Predictor` module (two nn.Linear)."""

    def __init__(self, w_rna, b_rna, w_drug, b_drug):
        H, K = w_rna.shape
        self.hidden_dim = int(H)
        self.in_dim = int(K)
        Np = _round_up(H, 128)
        Kp = _round_up(K, 128)
        # Stack + zero-pad ONCE at parameter-prep time (hoisted out of the
        # per-call path).  Zero K padding is accumulation-safe; padded N
        # columns are sliced off in the forward.
        w = jnp.stack([w_rna, w_drug]).astype(jnp.float32)            # (2, H, K)
        self.w_packed = jnp.pad(w, ((0, 0), (0, Np - H), (0, Kp - K)))
        b = jnp.stack([b_rna, b_drug]).astype(jnp.float32).reshape(2, 1, H)
        self.b_packed = jnp.pad(b, ((0, 0), (0, 0), (0, Np - H)))

    def __call__(self, p_feat, d_feat, *, force_pallas=False, use_bf16_mxu=False):
        return _predictor_forward(p_feat, d_feat, self.w_packed, self.b_packed,
                                  self.hidden_dim, force_pallas, use_bf16_mxu)


if __name__ == "__main__":
    # ---------------- small demo shapes (module-sized) ----------------------
    batch, in_dim, hidden_dim = 8, 32, 32
    key = jax.random.PRNGKey(0)
    k1, k2, k3, k4, k5, k6 = jax.random.split(key, 6)

    p_feat = jax.random.normal(k1, (batch, in_dim), dtype=jnp.float32)
    d_feat = jax.random.normal(k2, (batch, in_dim), dtype=jnp.float32)

    bound = 1.0 / (in_dim ** 0.5)
    w_rna = jax.random.uniform(k3, (hidden_dim, in_dim), jnp.float32, -bound, bound)
    b_rna = jax.random.uniform(k4, (hidden_dim,), jnp.float32, -bound, bound)
    w_drug = jax.random.uniform(k5, (hidden_dim, in_dim), jnp.float32, -bound, bound)
    b_drug = jax.random.uniform(k6, (hidden_dim,), jnp.float32, -bound, bound)

    model = PallasPredictor(w_rna, b_rna, w_drug, b_drug)

    # Pallas path (forced: the demo shapes sit below the tiny-shape fallback cut).
    new_p, new_d = model(p_feat, d_feat, force_pallas=True)
    jax.block_until_ready((new_p, new_d))

    ref_p = jnp.dot(p_feat, w_rna.T, precision=lax.Precision.HIGHEST) + b_rna
    ref_d = jnp.dot(d_feat, w_drug.T, precision=lax.Precision.HIGHEST) + b_drug
    assert new_p.shape == ref_p.shape and new_d.shape == ref_d.shape
    assert jnp.allclose(new_p, ref_p, atol=1e-5), "rna_layer mismatch (pallas)"
    assert jnp.allclose(new_d, ref_d, atol=1e-5), "drug_layer mismatch (pallas)"

    # Default path at tiny shapes takes the XLA fallback; must also match.
    fb_p, fb_d = model(p_feat, d_feat)
    jax.block_until_ready((fb_p, fb_d))
    assert jnp.allclose(fb_p, ref_p, atol=1e-5), "rna_layer mismatch (fallback)"
    assert jnp.allclose(fb_d, ref_d, atol=1e-5), "drug_layer mismatch (fallback)"

    # ------- second shape exercising the multi-K accumulating kernel --------
    B2, K2, H2 = 64, 2304, 256            # Kp=2304 > tk cap -> 2 K grid steps
    ka, kb, kc, kd, ke, kf = jax.random.split(jax.random.PRNGKey(1), 6)
    p2 = jax.random.normal(ka, (B2, K2), dtype=jnp.float32)
    d2 = jax.random.normal(kb, (B2, K2), dtype=jnp.float32)
    bound2 = 1.0 / (K2 ** 0.5)
    w_rna2 = jax.random.uniform(kc, (H2, K2), jnp.float32, -bound2, bound2)
    b_rna2 = jax.random.uniform(kd, (H2,), jnp.float32, -bound2, bound2)
    w_drug2 = jax.random.uniform(ke, (H2, K2), jnp.float32, -bound2, bound2)
    b_drug2 = jax.random.uniform(kf, (H2,), jnp.float32, -bound2, bound2)

    model2 = PallasPredictor(w_rna2, b_rna2, w_drug2, b_drug2)
    out_p2, out_d2 = model2(p2, d2)       # above the fallback cut -> Pallas path
    jax.block_until_ready((out_p2, out_d2))
    ref_p2 = jnp.dot(p2, w_rna2.T, precision=lax.Precision.HIGHEST) + b_rna2
    ref_d2 = jnp.dot(d2, w_drug2.T, precision=lax.Precision.HIGHEST) + b_drug2
    assert jnp.allclose(out_p2, ref_p2, rtol=1e-3, atol=1e-3), "rna mismatch (multi-K)"
    assert jnp.allclose(out_d2, ref_d2, rtol=1e-3, atol=1e-3), "drug mismatch (multi-K)"

    print("KERNEL_OK")
</pallas_src>

<mosaic_0001>
module attributes {stable_mosaic.version = 11 : i64} {
  func.func @_linear_kernel_single_k(%arg0: i32, %arg1: i32, %arg2: i32, %arg3: memref<1x8x128xf32, #tpu.memory_space<vmem>>, %arg4: memref<1x128x128xf32, #tpu.memory_space<vmem>>, %arg5: memref<1x1x128xf32, #tpu.memory_space<vmem>>, %arg6: memref<1x8x128xf32, #tpu.memory_space<vmem>>) attributes {dimension_semantics = [#tpu.dimension_semantics<parallel>, #tpu.dimension_semantics<parallel>, #tpu.dimension_semantics<parallel>], iteration_bounds = array<i64: 2, 1, 1>, scalar_prefetch = 0 : i64, scratch_operands = 0 : i64, tpu.core_type = #tpu.core_type<tc>, window_params = [{transform_indices = @transform_0, window_bounds = array<i64: 1, 8, 128>}, {transform_indices = @transform_1, window_bounds = array<i64: 1, 128, 128>}, {transform_indices = @transform_2, window_bounds = array<i64: 1, 1, 128>}, {transform_indices = @transform_3, window_bounds = array<i64: 1, 8, 128>}]} {
    %c0 = arith.constant 0 : index
    %c0_0 = arith.constant 0 : index
    %c0_1 = arith.constant 0 : index
    %0 = vector.load %arg3[%c0, %c0_0, %c0_1] : memref<1x8x128xf32, #tpu.memory_space<vmem>>, vector<1x8x128xf32>
    %1 = vector.shape_cast %0 : vector<1x8x128xf32> to vector<8x128xf32>
    %c0_2 = arith.constant 0 : index
    %c0_3 = arith.constant 0 : index
    %c0_4 = arith.constant 0 : index
    %2 = vector.load %arg4[%c0_2, %c0_3, %c0_4] : memref<1x128x128xf32, #tpu.memory_space<vmem>>, vector<1x128x128xf32>
    %3 = vector.shape_cast %2 : vector<1x128x128xf32> to vector<128x128xf32>
    %cst = arith.constant dense<0.000000e+00> : vector<8x128xf32>
    %4 = tpu.matmul %1, %3, %cst {dimension_numbers = #tpu.dot_dimension_numbers<[1], [1], [0], [0], [0, 0, 1, 0], [], []>} : vector<8x128xf32>, vector<128x128xf32>, vector<8x128xf32> -> vector<8x128xf32>
    %c0_5 = arith.constant 0 : index
    %c0_6 = arith.constant 0 : index
    %c0_7 = arith.constant 0 : index
    %5 = vector.load %arg5[%c0_5, %c0_6, %c0_7] : memref<1x1x128xf32, #tpu.memory_space<vmem>>, vector<1x1x128xf32>
    %6 = vector.shape_cast %5 : vector<1x1x128xf32> to vector<1x128xf32>
    %7 = vector.broadcast %6 : vector<1x128xf32> to vector<8x128xf32>
    %8 = arith.addf %4, %7 : vector<8x128xf32>
    %c0_8 = arith.constant 0 : index
    %c0_9 = arith.constant 0 : index
    %c0_10 = arith.constant 0 : index
    %9 = vector.load %arg6[%c0_8, %c0_9, %c0_10] : memref<1x8x128xf32, #tpu.memory_space<vmem>>, vector<1x8x128xf32>
    %10 = vector.shape_cast %9 : vector<1x8x128xf32> to vector<8x128xf32>
    %11 = vector.shape_cast %8 : vector<8x128xf32> to vector<1x8x128xf32>
    tpu.vector_store %arg6[%c0_8, %c0_9, %c0_10], %11 {strides = array<i32>} : memref<1x8x128xf32, #tpu.memory_space<vmem>>, vector<1x8x128xf32>,
    return
  }
  func.func @transform_0(%arg0: i32, %arg1: i32, %arg2: i32) -> (i32, i32, i32) {
    %c0_i32 = arith.constant 0 : i32
    %c0_i32_0 = arith.constant 0 : i32
    return %arg0, %arg1, %c0_i32 : i32, i32, i32
  }
  func.func @transform_1(%arg0: i32, %arg1: i32, %arg2: i32) -> (i32, i32, i32) {
    %c0_i32 = arith.constant 0 : i32
    %c0_i32_0 = arith.constant 0 : i32
    return %arg0, %arg2, %c0_i32 : i32, i32, i32
  }
  func.func @transform_2(%arg0: i32, %arg1: i32, %arg2: i32) -> (i32, i32, i32) {
    %c0_i32 = arith.constant 0 : i32
    %c0_i32_0 = arith.constant 0 : i32
    return %arg0, %c0_i32, %arg2 : i32, i32, i32
  }
  func.func @transform_3(%arg0: i32, %arg1: i32, %arg2: i32) -> (i32, i32, i32) {
    %c0_i32 = arith.constant 0 : i32
    return %arg0, %arg1, %arg2 : i32, i32, i32
  }
}

</mosaic_0001>

<llo_original>
// kernel: _predictor_forward.1
$region0: #{_predictor_forward.1}
  #allocation0 [shape = 'u32[]', space=smem, size = 0x4, offset = 0x4, fixed_abs, tag = 'smem constant byte address 0x4 - core index']
  #allocation1 [shape = 'u32[72,128]{1,0:T(1,128)}', space=vmem, size = 0x9000, scoped, tag = 'internal scratch']
  %s0 = inlined_call_operand.vmem [shape: f32[2,8,128], index: 0, kind: input, shape index: {}]
  %s1 = inlined_call_operand.hbm [shape: f32[2,128,128], index: 1, kind: input, shape index: {}]
  %s2 = inlined_call_operand.vmem [shape: f32[2,1,128], index: 2, kind: input, shape index: {}]
  %s3 = inlined_call_operand.vmem [shape: f32[2,8,128], index: 3, kind: output, shape index: {}]
  %s4 = sld [smem:[#allocation0]]
  $region49: #{_predictor_forward.1} parent=0
    _
  %s6 = ssub.s32 1, %s4
  %s7 = scalar_select 0, %s6, %s4
  $region1: #{_predictor_forward.1} parent=0
    #allocation2 [shape = 'u8[131072]{0}', space=vmem, size = 0x20000, scoped, tag = 'input window, operand 1']
    #allocation3 [shape = 's32[2]{0}', space=sflag, size = 0x8, scoped, tag = 'scoped memory for _predictor_forward.1']
    %8 = vsyncpa [#allocation3], 0
    %s9 = scalar_lea.sflag [#allocation3], 1
    %10 = vsyncpa %s9, 0
    loop: start=0, step=1, limit=4
    $region2: #{_predictor_forward.1} parent=1 // loop_pre_header
      _
    $region3: #{_predictor_forward.1} parent=1 // loop_header
      %s12 = sphi 0, %s16
      %p13 = scmp.ge.s32.totalorder %s12, 4
      %s19 = sphi 0, %s38
      %s20 = sphi 0, %s34
      %s21 = sphi 0, %s30
      %s22 = sphi 0, %s19
      %s23 = sphi 0, %s20
      %s24 = sphi 0, %s21
      %s25 = sphi 0, %s22
      %s26 = sphi 0, %s23
      %s27 = sphi 0, %s24
      %s43 = sphi 0, %s45
      %s46 = sphi 0, %s43
      %s47 = sphi 0, %s46
      %s63 = sphi 0, %s47
      %s71 = sphi 0, %s73
      %s74 = sphi 0, %s71
      %s75 = sphi 0, %s74
      %s91 = sphi 0, %s75
      %s99 = sphi 0, %s101
      %s102 = sphi 0, %s99
      %s103 = sphi 0, %s102
      %s119 = sphi 0, %s103
      %s129 = sphi 0, %s131
      %s132 = sphi 0, %s129
      %s133 = sphi 0, %s132
      %s149 = sphi 0, %s133
    $region4: #{_predictor_forward.1} parent=1 // loop_header_branch
      %15 = sbr.rel (%p13) target = $region8
    $region5: #{_predictor_forward.1} parent=1 // loop_body
      %s17 = ssub.s32 %s12, 1
      %s18 = ssub.s32 %s12, 2
      %s28 = sadd.s32 1, %s21
      %p29 = scmp.ge.s32.totalorder %s28, 1
      %s30 = scalar_select %p29, 0, %s28
      %s31 = sadd.s32 1, %s20
      %s32 = scalar_select %p29, %s31, %s20
      %p33 = scmp.ge.s32.totalorder %s32, 1
      %s34 = scalar_select %p33, 0, %s32
      %s35 = sadd.s32 1, %s19
      %s36 = scalar_select %p33, %s35, %s19
      %p37 = scmp.ge.s32.totalorder %s36, 2
      %s38 = scalar_select %p37, 0, %s36
      %s39 = ssub.s32 %s19, %s38
      %s40 = ssub.s32 %s20, %s34
      %s41 = sor.u32 %s39, %s40
      %p42 = scmp.eq.s32.totalorder %s41, 0
      %s44 = sadd.s32 %s43, 1
      %s45 = scalar_select %p42, %s43, %s44
      %p48 = pneg %p42
      %p49 = scmp.eq.s32.totalorder %s12, 1
      %p50 = por %p48, %p49
      %p51 = scmp.ne.s32.totalorder %s43, %s46
      %p52 = scmp.eq.s32.totalorder %s12, 0
      %p53 = por %p51, %p52
      %p54 = scmp.ne.s32.totalorder %s43, %s46
      %p55 = scmp.eq.s32.totalorder %s17, 1
      %p56 = por %p54, %p55
      %p57 = scmp.ne.s32.totalorder %s46, %s47
      %p58 = scmp.eq.s32.totalorder %s17, 0
      %p59 = por %p57, %p58
      %p60 = scmp.ne.s32.totalorder %s46, %s47
      %p61 = scmp.eq.s32.totalorder %s18, 1
      %p62 = por %p60, %p61
      %p64 = scmp.ne.s32.totalorder %s47, %s63
      %p65 = scmp.eq.s32.totalorder %s18, 0
      %p66 = por %p64, %p65
      %s67 = ssub.s32 %s19, %s38
      %s68 = ssub.s32 %s21, %s30
      %s69 = sor.u32 %s67, %s68
      %p70 = scmp.eq.s32.totalorder %s69, 0
      %s72 = sadd.s32 %s71, 1
      %s73 = scalar_select %p70, %s71, %s72
      %p76 = pneg %p70
      %p77 = scmp.eq.s32.totalorder %s12, 1
      %p78 = por %p76, %p77
      %p79 = scmp.ne.s32.totalorder %s71, %s74
      %p80 = scmp.eq.s32.totalorder %s12, 0
      %p81 = por %p79, %p80
      %p82 = scmp.ne.s32.totalorder %s71, %s74
      %p83 = scmp.eq.s32.totalorder %s17, 1
      %p84 = por %p82, %p83
      %p85 = scmp.ne.s32.totalorder %s74, %s75
      %p86 = scmp.eq.s32.totalorder %s17, 0
      %p87 = por %p85, %p86
      %p88 = scmp.ne.s32.totalorder %s74, %s75
      %p89 = scmp.eq.s32.totalorder %s18, 1
      %p90 = por %p88, %p89
      %p92 = scmp.ne.s32.totalorder %s75, %s91
      %p93 = scmp.eq.s32.totalorder %s18, 0
      %p94 = por %p92, %p93
      %s95 = ssub.s32 %s19, %s38
      %s96 = ssub.s32 %s21, %s30
      %s97 = sor.u32 %s95, %s96
      %p98 = scmp.eq.s32.totalorder %s97, 0
      %s100 = sadd.s32 %s99, 1
      %s101 = scalar_select %p98, %s99, %s100
      %p104 = pneg %p98
      %p105 = scmp.eq.s32.totalorder %s12, 1
      %p106 = por %p104, %p105
      %p107 = scmp.ne.s32.totalorder %s99, %s102
      %p108 = scmp.eq.s32.totalorder %s12, 0
      %p109 = por %p107, %p108
      %p110 = scmp.ne.s32.totalorder %s99, %s102
      %p111 = scmp.eq.s32.totalorder %s17, 1
      %p112 = por %p110, %p111
      %p113 = scmp.ne.s32.totalorder %s102, %s103
      %p114 = scmp.eq.s32.totalorder %s17, 0
      %p115 = por %p113, %p114
      %p116 = scmp.ne.s32.totalorder %s102, %s103
      %p117 = scmp.eq.s32.totalorder %s18, 1
      %p118 = por %p116, %p117
      %p120 = scmp.ne.s32.totalorder %s103, %s119
      %p121 = scmp.eq.s32.totalorder %s18, 0
      %p122 = por %p120, %p121
      %s123 = ssub.s32 %s19, %s38
      %s124 = ssub.s32 %s20, %s34
      %s125 = sor.u32 %s123, %s124
      %s126 = ssub.s32 %s21, %s30
      %s127 = sor.u32 %s125, %s126
      %p128 = scmp.eq.s32.totalorder %s127, 0
      %s130 = sadd.s32 %s129, 1
      %s131 = scalar_select %p128, %s129, %s130
      %p134 = pneg %p128
      %p135 = scmp.eq.s32.totalorder %s12, 1
      %p136 = por %p134, %p135
      %p137 = scmp.ne.s32.totalorder %s129, %s132
      %p138 = scmp.eq.s32.totalorder %s12, 0
      %p139 = por %p137, %p138
      %p140 = scmp.ne.s32.totalorder %s129, %s132
      %p141 = scmp.eq.s32.totalorder %s17, 1
      %p142 = por %p140, %p141
      %p143 = scmp.ne.s32.totalorder %s132, %s133
      %p144 = scmp.eq.s32.totalorder %s17, 0
      %p145 = por %p143, %p144
      %p146 = scmp.ne.s32.totalorder %s132, %s133
      %p147 = scmp.eq.s32.totalorder %s18, 1
      %p148 = por %p146, %p147
      %p150 = scmp.ne.s32.totalorder %s133, %s149
      %p151 = scmp.eq.s32.totalorder %s18, 0
      %p152 = por %p150, %p151
      %p153 = scmp.le.s32.totalorder 1, %s12
      %p154 = scmp.lt.s32.totalorder %s12, 3
      %p155 = pnand %p153, %p154
      %p156 = pneg %p155
      // Predicated region
      $region9: #{_predictor_forward.1} parent=5 // pred_check
        _
      $region10: #{_predictor_forward.1} parent=5 // pred_check_branch
        %158 = sbr.rel (%p155) target = $region12
      $region11: #{_predictor_forward.1} parent=5 // pred_region
        %s159 = ssub.s32 %s12, 1
      $region12: #{_predictor_forward.1} parent=5 // pred_fallthru
        _
      %p160 = scmp.lt.s32.totalorder %s12, 2
      // Predicated region
      $region13: #{_predictor_forward.1} parent=5 // pred_check
        %p161 = pneg %p160
      $region14: #{_predictor_forward.1} parent=5 // pred_check_branch
        %163 = sbr.rel (%p161) target = $region16
      $region15: #{_predictor_forward.1} parent=5 // pred_region
        // Predicated region
        $region17: #{_predictor_forward.1} parent=15 // pred_check
          %p164 = pneg %p53
        $region18: #{_predictor_forward.1} parent=15 // pred_check_branch
          %166 = sbr.rel (%p164) target = $region20
        $region19: #{_predictor_forward.1} parent=15 // pred_region
          %p167 = scmp.lt.s32.totalorder %s19, 1
          %s168 = scalar_select %p167, %s19, 1
          %p169 = scmp.lt.s32.totalorder %s20, 0
          %s170 = scalar_select %p169, %s20, 0
          %s171 = sadd.s32 %s170, %s168
          %s172 = smul.addr %s171, 8
          %s173 = scalar_lea.vmem %s0, %s172
        $region20: #{_predictor_forward.1} parent=15 // pred_fallthru
          _
        // Predicated region
        $region21: #{_predictor_forward.1} parent=15 // pred_check
          %p174 = pneg %p81
        $region22: #{_predictor_forward.1} parent=15 // pred_check_branch
          %176 = sbr.rel (%p174) target = $region24
        $region23: #{_predictor_forward.1} parent=15 // pred_region
          %s177 = sand.u32 %s71, 1
          %s178 = scalar_lea.sflag [#allocation3], %s177
          %s179 = sand.u32 %s71, 1
          %s180 = smul.addr %s179, 128
          %s181 = scalar_lea.vmem [#allocation2], %s180
          %s182 = smul.u32 16, %s21
          %184 = vsyncadd %s178, 0
          %s185 = smul.addr %s19, 16
          %s186 = sadd.s32 %s182, %s185
          %s187 = smul.addr %s186, 8
          %s188 = scalar_lea.hbm %s1, %s187
          %s189 = sshll.u32 %s188, 4
          %s190 = int_to_ptr.hbm [resolvable:$true] %s189
          %s191 = sshll.u32 %s181, 4
          %s192 = int_to_ptr.vmem [resolvable:$true] %s191
          %197 = dma.hbm_to_vmem [thread:$0]  %s190, 2048, %s192, %s178, 128, 128, 8
        $region24: #{_predictor_forward.1} parent=15 // pred_fallthru
          _
        // Predicated region
        $region25: #{_predictor_forward.1} parent=15 // pred_check
          %p198 = pneg %p109
        $region26: #{_predictor_forward.1} parent=15 // pred_check_branch
          %200 = sbr.rel (%p198) target = $region28
        $region27: #{_predictor_forward.1} parent=15 // pred_region
          %p201 = scmp.lt.s32.totalorder %s19, 1
          %s202 = scalar_select %p201, %s19, 1
          %p203 = scmp.lt.s32.totalorder %s21, 0
          %s204 = scalar_select %p203, %s21, 0
          %s205 = sadd.s32 %s204, %s202
          %s206 = scalar_lea.vmem %s2, %s205
        $region28: #{_predictor_forward.1} parent=15 // pred_fallthru
          _
      $region16: #{_predictor_forward.1} parent=5 // pred_fallthru
        _
      %p207 = scmp.le.s32.totalorder 1, %s12
      %p208 = scmp.lt.s32.totalorder %s12, 3
      %p209 = pnand %p207, %p208
      %p210 = pneg %p209
      // Predicated region
      $region29: #{_predictor_forward.1} parent=5 // pred_check
        _
      $region30: #{_predictor_forward.1} parent=5 // pred_check_branch
        %212 = sbr.rel (%p209) target = $region32
      $region31: #{_predictor_forward.1} parent=5 // pred_region
        %s213 = ssub.s32 %s12, 1
        %s214 = sand.u32 %s74, 1
        %s215 = scalar_lea.sflag [#allocation3], %s214
        %s216 = sand.u32 %s74, 1
        %s217 = smul.addr %s216, 128
        %s218 = scalar_lea.vmem [#allocation2], %s217
        // Predicated region
        $region33: #{_predictor_forward.1} parent=31 // pred_check
          %p219 = pneg %p87
        $region34: #{_predictor_forward.1} parent=31 // pred_check_branch
          %221 = sbr.rel (%p219) target = $region36
        $region35: #{_predictor_forward.1} parent=31 // pred_region
          %223 = dma.done %s215, 2048
        $region36: #{_predictor_forward.1} parent=31 // pred_fallthru
          _
        %p224 = scmp.lt.s32.totalorder %s22, 1
        %s225 = scalar_select %p224, %s22, 1
        %p226 = scmp.lt.s32.totalorder %s23, 0
        %s227 = scalar_select %p226, %s23, 0
        %s228 = sadd.s32 %s227, %s225
        %s229 = smul.addr %s228, 8
        %s230 = scalar_lea.vmem %s0, %s229
        %p231 = pneg %p59
        %p232 = pneg %p56
        %s233 = sand.u32 %s74, 1
        %s234 = scalar_lea.sflag [#allocation3], %s233
        %s235 = sand.u32 %s74, 1
        %s236 = smul.addr %s235, 128
        %s237 = scalar_lea.vmem [#allocation2], %s236
        %p238 = pneg %p87
        %p239 = pneg %p84
        %p240 = scmp.lt.s32.totalorder %s22, 1
        %s241 = scalar_select %p240, %s22, 1
        %p242 = scmp.lt.s32.totalorder %s24, 0
        %s243 = scalar_select %p242, %s24, 0
        %s244 = sadd.s32 %s243, %s241
        %s245 = scalar_lea.vmem %s2, %s244
        %p246 = pneg %p115
        %p247 = pneg %p112
        %p248 = pneg %p145
        %p249 = pneg %p142
        %p250 = scmp.lt.s32.totalorder %s22, 1
        %s251 = scalar_select %p250, %s22, 1
        %p252 = scmp.lt.s32.totalorder %s23, 0
        %s253 = scalar_select %p252, %s23, 0
        %p254 = scmp.lt.s32.totalorder %s24, 0
        %s255 = scalar_select %p254, %s24, 0
        %s256 = sadd.s32 %s255, %s253
        %s257 = sadd.s32 %s256, %s251
        %s258 = smul.addr %s257, 8
        %s259 = scalar_lea.vmem %s3, %s258
        %p260 = scmp.lt.s32.totalorder %s22, 1
        %s261 = scalar_select %p260, %s22, 1
        %p262 = scmp.lt.s32.totalorder %s23, 0
        %s263 = scalar_select %p262, %s23, 0
        %s264 = sadd.s32 %s263, %s261
        %s265 = smul.addr %s264, 8
        %s266 = scalar_lea.vmem %s0, %s265
        %s267 = smul.u32 16, %s24
        %p268 = scmp.lt.s32.totalorder %s22, 1
        %s269 = scalar_select %p268, %s22, 1
        %p270 = scmp.lt.s32.totalorder %s24, 0
        %s271 = scalar_select %p270, %s24, 0
        %s272 = sadd.s32 %s271, %s269
        %s273 = scalar_lea.vmem %s2, %s272
        %p274 = scmp.lt.s32.totalorder %s22, 1
        %s275 = scalar_select %p274, %s22, 1
        %p276 = scmp.lt.s32.totalorder %s23, 0
        %s277 = scalar_select %p276, %s23, 0
        %p278 = scmp.lt.s32.totalorder %s24, 0
        %s279 = scalar_select %p278, %s24, 0
        %s280 = sadd.s32 %s279, %s277
        %s281 = sadd.s32 %s280, %s275
        %s282 = smul.addr %s281, 8
        %s283 = scalar_lea.vmem %s3, %s282
        %v284 = vld [vmem:[%s266] sm:$0xff]
        %v285 = vld [vmem:[%s218] sm:$0xff]
        %v286 = vld [vmem:[%s218 + $0x8] sm:$0xff]
        %v287 = vld [vmem:[%s218 + $0x10] sm:$0xff]
        %v288 = vld [vmem:[%s218 + $0x18] sm:$0xff]
        %v289 = vld [vmem:[%s218 + $0x20] sm:$0xff]
        %v290 = vld [vmem:[%s218 + $0x28] sm:$0xff]
        %v291 = vld [vmem:[%s218 + $0x30] sm:$0xff]
        %v292 = vld [vmem:[%s218 + $0x38] sm:$0xff]
        %v293 = vld [vmem:[%s218 + $0x40] sm:$0xff]
        %v294 = vld [vmem:[%s218 + $0x48] sm:$0xff]
        %v295 = vld [vmem:[%s218 + $0x50] sm:$0xff]
        %v296 = vld [vmem:[%s218 + $0x58] sm:$0xff]
        %v297 = vld [vmem:[%s218 + $0x60] sm:$0xff]
        %v298 = vld [vmem:[%s218 + $0x68] sm:$0xff]
        %v299 = vld [vmem:[%s218 + $0x70] sm:$0xff]
        %v300 = vld [vmem:[%s218 + $0x78] sm:$0xff]
        %v301 = vld [vmem:[%s273] sm:$0x1]
        %v303 = vperm.slane %v301, 0
        %305 = vmatpush.xpose.msra.mxu0 %v300
        %306 = vmatpush.xpose.msra.mxu0 %v299
        %307 = vmatpush.xpose.msra.mxu0 %v298
        %308 = vmatpush.xpose.msra.mxu0 %v297
        %309 = vmatpush.xpose.msra.mxu0 %v296
        %310 = vmatpush.xpose.msra.mxu0 %v295
        %311 = vmatpush.xpose.msra.mxu0 %v294
        %312 = vmatpush.xpose.msra.mxu0 %v293
        %313 = vmatpush.xpose.msra.mxu0 %v292
        %314 = vmatpush.xpose.msra.mxu0 %v291
        %315 = vmatpush.xpose.msra.mxu0 %v290
        %316 = vmatpush.xpose.msra.mxu0 %v289
        %317 = vmatpush.xpose.msra.mxu0 %v288
        %318 = vmatpush.xpose.msra.mxu0 %v287
        %319 = vmatpush.xpose.msra.mxu0 %v286
        %320 = vmatpush.xpose.msra.mxu0 %v285
        %321 = vmatmul.f32.gmra.mxu0 %v284
        %v322 = vpop.f32.mrf.mxu0
        %v323 = vadd.f32 %v303, %v322
        %324 = vdwg.mxu0
        %325 = vst [vmem:[%s283] sm:$0xff] %v323
        %p326 = scmp.lt.s32.totalorder %s22, 1
        %s327 = scalar_select %p326, %s22, 1
        %p328 = scmp.lt.s32.totalorder %s23, 0
        %s329 = scalar_select %p328, %s23, 0
        %p330 = scmp.lt.s32.totalorder %s24, 0
        %s331 = scalar_select %p330, %s24, 0
        %s332 = sadd.s32 %s331, %s329
        %s333 = sadd.s32 %s332, %s327
        %s334 = smul.addr %s333, 8
        %s335 = scalar_lea.vmem %s3, %s334
        // Predicated region
        $region37: #{_predictor_forward.1} parent=31 // pred_check
          %p336 = pneg %p142
        $region38: #{_predictor_forward.1} parent=31 // pred_check_branch
          %338 = sbr.rel (%p336) target = $region40
        $region39: #{_predictor_forward.1} parent=31 // pred_region
          _
        $region40: #{_predictor_forward.1} parent=31 // pred_fallthru
          _
      $region32: #{_predictor_forward.1} parent=5 // pred_fallthru
        _
      %p339 = scmp.le.s32.totalorder 2, %s12
      // Predicated region
      $region41: #{_predictor_forward.1} parent=5 // pred_check
        %p340 = pneg %p339
      $region42: #{_predictor_forward.1} parent=5 // pred_check_branch
        %342 = sbr.rel (%p340) target = $region44
      $region43: #{_predictor_forward.1} parent=5 // pred_region
        %s343 = ssub.s32 %s12, 2
        // Predicated region
        $region45: #{_predictor_forward.1} parent=43 // pred_check
          %p344 = pneg %p148
        $region46: #{_predictor_forward.1} parent=43 // pred_check_branch
          %346 = sbr.rel (%p344) target = $region48
        $region47: #{_predictor_forward.1} parent=43 // pred_region
          %p347 = scmp.lt.s32.totalorder %s25, 1
          %s348 = scalar_select %p347, %s25, 1
          %p349 = scmp.lt.s32.totalorder %s26, 0
          %s350 = scalar_select %p349, %s26, 0
          %p351 = scmp.lt.s32.totalorder %s27, 0
          %s352 = scalar_select %p351, %s27, 0
          %s353 = sadd.s32 %s352, %s350
          %s354 = sadd.s32 %s353, %s348
          %s355 = smul.addr %s354, 8
          %s356 = scalar_lea.vmem %s3, %s355
        $region48: #{_predictor_forward.1} parent=43 // pred_fallthru
          _
      $region44: #{_predictor_forward.1} parent=5 // pred_fallthru
        _
    $region6: #{_predictor_forward.1} parent=1 // loop_footer
      %s16 = sadd.s32 1, %s12
    $region7: #{_predictor_forward.1} parent=1 // loop_footer_branch
      %11 = sbr.rel target = $region3
    $region8: #{_predictor_forward.1} parent=1 // loop_exit
      _
    %357 = vsyncpa [#allocation3], 1
    %s358 = scalar_lea.sflag [#allocation3], 1
    %359 = vsyncpa %s358, 1

</llo_original>
